<compile_context>
chip_gen: v7x
topology: tpu7x:2x2x1
jax: 0.10.0
libtpu: 0.0.40
codegen_flags: <defaults>
</compile_context>

<pallas_src>
import functools

import jax
import jax.numpy as jnp
from jax.experimental import pallas as pl
from jax.experimental.pallas import tpu as pltpu

EPS = 1e-5


def _physical_vmem_bytes():
    """Generation-aware VMEM capacity (per TensorCore)."""
    try:
        kind = jax.devices()[0].device_kind.lower()
    except Exception:  # pragma: no cover - be conservative if query fails
        kind = ""
    if "v7" in kind:
        return 64 * 1024 * 1024
    if "v2" in kind or "v3" in kind:
        return 32 * 1024 * 1024
    return 128 * 1024 * 1024  # v4 / v5e / v5p / v6e


def _plan_tiling(n, c, hw, itemsize, requested_ct=None, min_grid_steps=4):
    """Pick a channel tile Ct and a VMEM limit.

    Accounts for double-buffered in/out blocks plus the in-kernel temporaries
    (f32 working copies for sub-f32 inputs, the squared slab, the apply result,
    and the resident MXU `ones` operand), so the stated VMEM budget is honest.
    """
    vmem_phys = _physical_vmem_bytes()
    vmem_limit = min(int(0.75 * vmem_phys), 96 * 1024 * 1024)  # 48 MiB v7x, 96 MiB 128-MiB parts

    def live_bytes(ct):
        elems = n * ct * hw
        io = 4 * elems * itemsize              # double-buffered input + output blocks
        if itemsize >= 4:
            temps = 2 * elems * 4              # x*x + apply-result f32 temporaries
        else:
            # x*x (native) + f32 working copy + f32 apply result + resident MXU ones
            temps = elems * itemsize + 2 * elems * 4 + n * 8 * hw * itemsize
        return io + temps + (2 << 20)          # ~2 MiB slack: params, stats, compiler scratch

    def check_fits(ct):
        need = live_bytes(ct)
        if need > vmem_limit:
            # TODO(synk): add a two-pass fallback (stats accumulation over an
            # 'arbitrary' batch-grid axis into a small VMEM scratch, then an
            # apply pass) so a single block no longer has to hold the full batch.
            raise ValueError(
                f"IBN Pallas kernel: channel tile {ct} needs ~{need / 2**20:.1f} MiB "
                f"of VMEM but only {vmem_limit / 2**20:.1f} MiB are budgeted on this "
                f"TPU generation (shape N={n}, HW={hw}, itemsize={itemsize})."
            )

    if requested_ct is not None:
        ct = int(requested_ct)
        if c % ct != 0 or not (ct % 8 == 0 or ct == c):
            raise ValueError(f"invalid channel tile {ct} for C={c}")
        check_fits(ct)
        return ct, vmem_limit

    if c % 8 != 0:
        # tiny / ragged channel count: single full-channel block
        check_fits(c)
        return c, vmem_limit

    candidates = [ct for ct in range(8, c + 1, 8)
                  if c % ct == 0 and live_bytes(ct) <= vmem_limit]
    if not candidates:
        check_fits(8)  # raises with a clear message

    # Prefer the largest tile that still leaves >= min_grid_steps grid steps
    # (megacore split + DMA/compute overlap); otherwise maximize the step count.
    pipelined = [ct for ct in candidates if c // ct >= min_grid_steps]
    ct = max(pipelined) if pipelined else min(candidates)
    return ct, vmem_limit


def _ibn_body(x_ref, g_ref, b_ref, o_ref, ones_ref, *, half1, ct):
    # x_ref / o_ref: (N, Ct, HW) channel slab (full batch + full spatial extent)
    # g_ref / b_ref: (1, C, 1) resident affine params (fetched once, reused every step)
    # ones_ref:      (N, 8, HW) resident MXU reduction operand (sub-f32 path only)
    n = x_ref.shape[0]
    hw = x_ref.shape[2]

    i = pl.program_id(0)
    c0 = pl.multiple_of(i * ct, ct)   # global channel offset of this tile

    x = x_ref[...]

    if ones_ref is None:
        # f32 path: spatial (lane-axis) reductions on the VPU/XLU.  f32 inputs are
        # HBM-bound on every generation, so compute slots have slack, and f32 sums
        # keep the one-pass variance as accurate as possible.
        xf = x.astype(jnp.float32)
        s1 = jnp.sum(xf, axis=-1, keepdims=True)         # sum x    per (n, c): (N, Ct, 1)
        s2 = jnp.sum(xf * xf, axis=-1, keepdims=True)    # sum x^2  per (n, c): (N, Ct, 1)
    else:
        # sub-f32 (bf16) path: with 16-bit inputs the kernel can flip to VALU-bound
        # (notably on v7x), so push the two spatial reductions onto the otherwise
        # idle MXU as batched matmuls against a resident ones operand.  s1 is exact
        # (bf16 values, f32 accumulate); s2 uses bf16-rounded squares, the same
        # precision the MXU would apply anyway.
        ones = ones_ref[...]                             # (N, 8, HW)
        s1 = jnp.einsum("nch,nkh->nck", x, ones,
                        preferred_element_type=jnp.float32)[:, :, 0:1]
        s2 = jnp.einsum("nch,nkh->nck", x * x, ones,
                        preferred_element_type=jnp.float32)[:, :, 0:1]

    # InstanceNorm stats: per (n, c).  1/HW folded into the tiny stats arrays.
    inv_hw = jnp.float32(1.0 / hw)
    mu_in = s1 * inv_hw
    var_in = s2 * inv_hw - mu_in * mu_in

    # BatchNorm (training-mode) stats: per channel over (N, HW), fused directly
    # from the summed moments (the tile holds the full batch).
    inv_nhw = jnp.float32(1.0 / (n * hw))
    sum1 = jnp.sum(s1, axis=0, keepdims=True)            # (1, Ct, 1)
    sum2 = jnp.sum(s2, axis=0, keepdims=True)
    mu_bn = sum1 * inv_nhw
    var_bn = sum2 * inv_nhw - mu_bn * mu_bn

    # Per-channel IN/BN selection (handles tiles straddling the half1 boundary).
    c_idx = c0 + jax.lax.broadcasted_iota(jnp.int32, (1, ct, 1), 1)
    is_in = c_idx < half1
    mu = jnp.where(is_in, mu_in, mu_bn)                          # (N, Ct, 1)
    var = jnp.maximum(jnp.where(is_in, var_in, var_bn), 0.0)     # clamp one-pass var

    # Affine folded into a single per-channel scale/shift (2 VPU ops/element on the
    # slab); gamma/beta sliced from the resident (1, C, 1) params.
    g = g_ref[:, pl.ds(c0, ct), :].astype(jnp.float32)           # (1, Ct, 1)
    b = b_ref[:, pl.ds(c0, ct), :].astype(jnp.float32)
    scale = g * jax.lax.rsqrt(var + EPS)                         # rsqrt -> EUP slot
    shift = b - mu * scale
    # Apply in f32 (avoids low-precision cancellation for offset data), cast on store.
    o_ref[...] = (x.astype(jnp.float32) * scale + shift).astype(o_ref.dtype)


def _ibn_kernel_f32(x_ref, g_ref, b_ref, o_ref, *, half1, ct):
    _ibn_body(x_ref, g_ref, b_ref, o_ref, None, half1=half1, ct=ct)


def _ibn_kernel_lowp(x_ref, g_ref, b_ref, ones_ref, o_ref, *, half1, ct):
    _ibn_body(x_ref, g_ref, b_ref, o_ref, ones_ref, half1=half1, ct=ct)


def ibn_forward(x, params, *, ct=None):
    """x: (N, C, H, W) NCHW like the PyTorch module. Returns (N, C, H, W)."""
    N, C, H, W = x.shape
    half1 = C // 2
    hw = H * W
    itemsize = x.dtype.itemsize

    ct, vmem_limit = _plan_tiling(N, C, hw, itemsize, requested_ct=ct)
    grid = (C // ct,)

    # Single contiguous reshape of the whole input; channel halves are carved
    # inside the kernel (no strided channel slices materialized in HBM).
    x3 = x.reshape(N, C, hw)
    gamma = jnp.concatenate([params["in_gamma"], params["bn_gamma"]]) \
        .astype(jnp.float32).reshape(1, C, 1)
    beta = jnp.concatenate([params["in_beta"], params["bn_beta"]]) \
        .astype(jnp.float32).reshape(1, C, 1)

    data_spec = pl.BlockSpec((N, ct, hw), lambda i: (0, i, 0))       # tiled slab
    resident = lambda shape: pl.BlockSpec(shape, lambda i: (0, 0, 0))  # fetched once

    in_specs = [data_spec, resident((1, C, 1)), resident((1, C, 1))]
    inputs = [x3, gamma, beta]

    use_mxu_stats = x.dtype == jnp.bfloat16
    if use_mxu_stats:
        ones = jnp.ones((N, 8, hw), x.dtype)      # resident MXU reduction operand
        in_specs.append(resident((N, 8, hw)))
        inputs.append(ones)
        kernel = functools.partial(_ibn_kernel_lowp, half1=half1, ct=ct)
    else:
        kernel = functools.partial(_ibn_kernel_f32, half1=half1, ct=ct)

    out = pl.pallas_call(
        kernel,
        out_shape=jax.ShapeDtypeStruct((N, C, hw), x.dtype),
        grid=grid,
        in_specs=in_specs,
        out_specs=data_spec,
        compiler_params=pltpu.CompilerParams(
            dimension_semantics=("parallel",),    # tiles independent -> megacore/2-TC split
            vmem_limit_bytes=vmem_limit,          # generation-aware, matches the tile planner
        ),
    )(*inputs)

    return out.reshape(N, C, H, W)


def ibn_reference(x, params):
    """Plain-JAX reference mirroring the PyTorch forward."""
    N, C, H, W = x.shape
    h1 = C // 2
    x_in, x_bn = x[:, :h1], x[:, h1:]

    mu = x_in.mean(axis=(2, 3), keepdims=True)
    var = ((x_in - mu) ** 2).mean(axis=(2, 3), keepdims=True)
    y_in = (x_in - mu) / jnp.sqrt(var + EPS)
    y_in = y_in * params["in_gamma"].reshape(1, h1, 1, 1) + params["in_beta"].reshape(1, h1, 1, 1)

    mu_b = x_bn.mean(axis=(0, 2, 3), keepdims=True)
    var_b = ((x_bn - mu_b) ** 2).mean(axis=(0, 2, 3), keepdims=True)
    y_bn = (x_bn - mu_b) / jnp.sqrt(var_b + EPS)
    y_bn = y_bn * params["bn_gamma"].reshape(1, -1, 1, 1) + params["bn_beta"].reshape(1, -1, 1, 1)

    return jnp.concatenate([y_in, y_bn], axis=1)


def _make_params(key, planes):
    half1 = planes // 2
    half2 = planes - half1
    k1, k2, k3, k4 = jax.random.split(key, 4)
    return {
        "in_gamma": 1.0 + 0.1 * jax.random.normal(k1, (half1,), jnp.float32),
        "in_beta": 0.1 * jax.random.normal(k2, (half1,), jnp.float32),
        "bn_gamma": 1.0 + 0.1 * jax.random.normal(k3, (half2,), jnp.float32),
        "bn_beta": 0.1 * jax.random.normal(k4, (half2,), jnp.float32),
    }


if __name__ == "__main__":
    key = jax.random.PRNGKey(0)
    kx1, kp1, kx2, kp2, kx3, kp3 = jax.random.split(key, 6)

    # Case 1: tiny channel count (C % 8 != 0) -> single full-channel block; the
    # IN/BN boundary falls inside one tile, exercising the per-channel mask path.
    N1, planes1, H1, W1 = 2, 4, 16, 16
    x1 = jax.random.normal(kx1, (N1, planes1, H1, W1), jnp.float32)
    p1 = _make_params(kp1, planes1)
    out1 = jax.block_until_ready(ibn_forward(x1, p1))
    ref1 = ibn_reference(x1, p1)
    assert out1.shape == (N1, planes1, H1, W1)
    assert jnp.allclose(out1, ref1, atol=1e-5, rtol=1e-5), "case1 mismatch vs reference"

    # Case 2: multi-tile grid with an explicit channel tile -> pipelined "parallel"
    # grid; gamma/beta stay resident across steps.
    N2, planes2, H2, W2 = 2, 16, 16, 16
    x2 = jax.random.normal(kx2, (N2, planes2, H2, W2), jnp.float32)
    p2 = _make_params(kp2, planes2)
    out2 = jax.block_until_ready(ibn_forward(x2, p2, ct=8))
    ref2 = ibn_reference(x2, p2)
    assert out2.shape == (N2, planes2, H2, W2)
    assert jnp.allclose(out2, ref2, atol=1e-5, rtol=1e-5), "case2 mismatch vs reference"

    # Case 3: bf16 input -> MXU-offloaded spatial reductions, auto tile choice
    # (ct=8, grid=3), and a tile that straddles the IN/BN boundary (half = 12).
    N3, planes3, H3, W3 = 2, 24, 16, 16
    x3 = jax.random.normal(kx3, (N3, planes3, H3, W3), jnp.float32).astype(jnp.bfloat16)
    p3 = _make_params(kp3, planes3)
    out3 = jax.block_until_ready(ibn_forward(x3, p3))
    ref3 = ibn_reference(x3.astype(jnp.float32), p3)
    assert out3.shape == (N3, planes3, H3, W3)
    assert out3.dtype == jnp.bfloat16
    err = jnp.max(jnp.abs(out3.astype(jnp.float32) - ref3))
    assert err < 5e-2, f"case3 mismatch vs reference (max abs err {err})"

    print("KERNEL_OK")
</pallas_src>

<mosaic_0001>
module attributes {stable_mosaic.version = 11 : i64} {
  func.func @_ibn_kernel_f32(%arg0: i32, %arg1: memref<2x4x256xf32, #tpu.memory_space<vmem>>, %arg2: memref<1x4x1xf32, #tpu.memory_space<vmem>>, %arg3: memref<1x4x1xf32, #tpu.memory_space<vmem>>, %arg4: memref<2x4x256xf32, #tpu.memory_space<vmem>>) attributes {dimension_semantics = [#tpu.dimension_semantics<parallel>], iteration_bounds = array<i64: 1>, scalar_prefetch = 0 : i64, scratch_operands = 0 : i64, tpu.core_type = #tpu.core_type<tc>, window_params = [{transform_indices = @transform_0, window_bounds = array<i64: 2, 4, 256>}, {pipeline_mode = #tpu.pipeline_mode<synchronous>, transform_indices = @transform_1, window_bounds = array<i64: 1, 4, 1>}, {pipeline_mode = #tpu.pipeline_mode<synchronous>, transform_indices = @transform_2, window_bounds = array<i64: 1, 4, 1>}, {transform_indices = @transform_3, window_bounds = array<i64: 2, 4, 256>}]} {
    %c4_i32 = arith.constant 4 : i32
    %0 = arith.muli %arg0, %c4_i32 : i32
    %1 = tpu.assume_multiple %0, 4 : i32
    %c0 = arith.constant 0 : index
    %c0_0 = arith.constant 0 : index
    %c0_1 = arith.constant 0 : index
    %2 = vector.load %arg1[%c0, %c0_0, %c0_1] : memref<2x4x256xf32, #tpu.memory_space<vmem>>, vector<2x4x256xf32>
    %cst = arith.constant dense<0.000000e+00> : vector<2x4xf32>
    %3 = vector.multi_reduction <add>, %2, %cst [2] : vector<2x4x256xf32> to vector<2x4xf32>
    %4 = vector.shape_cast %3 : vector<2x4xf32> to vector<2x4x1xf32>
    %5 = arith.mulf %2, %2 : vector<2x4x256xf32>
    %cst_2 = arith.constant dense<0.000000e+00> : vector<2x4xf32>
    %6 = vector.multi_reduction <add>, %5, %cst_2 [2] : vector<2x4x256xf32> to vector<2x4xf32>
    %7 = vector.shape_cast %6 : vector<2x4xf32> to vector<2x4x1xf32>
    %cst_3 = arith.constant 3.906250e-03 : f32
    %8 = vector.broadcast %cst_3 : f32 to vector<2x4x1xf32>
    %9 = arith.mulf %4, %8 : vector<2x4x1xf32>
    %cst_4 = arith.constant 3.906250e-03 : f32
    %10 = vector.broadcast %cst_4 : f32 to vector<2x4x1xf32>
    %11 = arith.mulf %7, %10 : vector<2x4x1xf32>
    %12 = arith.mulf %9, %9 : vector<2x4x1xf32>
    %13 = arith.subf %11, %12 : vector<2x4x1xf32>
    %cst_5 = arith.constant dense<0.000000e+00> : vector<4x1xf32>
    %14 = vector.multi_reduction <add>, %4, %cst_5 [0] : vector<2x4x1xf32> to vector<4x1xf32>
    %15 = vector.shape_cast %14 : vector<4x1xf32> to vector<1x4x1xf32>
    %cst_6 = arith.constant dense<0.000000e+00> : vector<4x1xf32>
    %16 = vector.multi_reduction <add>, %7, %cst_6 [0] : vector<2x4x1xf32> to vector<4x1xf32>
    %17 = vector.shape_cast %16 : vector<4x1xf32> to vector<1x4x1xf32>
    %cst_7 = arith.constant 0.001953125 : f32
    %18 = vector.broadcast %cst_7 : f32 to vector<1x4x1xf32>
    %19 = arith.mulf %15, %18 : vector<1x4x1xf32>
    %cst_8 = arith.constant 0.001953125 : f32
    %20 = vector.broadcast %cst_8 : f32 to vector<1x4x1xf32>
    %21 = arith.mulf %17, %20 : vector<1x4x1xf32>
    %22 = arith.mulf %19, %19 : vector<1x4x1xf32>
    %23 = arith.subf %21, %22 : vector<1x4x1xf32>
    %24 = tpu.iota {dimensions = array<i32: 1>} : vector<1x4x1xi32>
    %25 = vector.broadcast %1 : i32 to vector<1x4x1xi32>
    %26 = arith.addi %25, %24 : vector<1x4x1xi32>
    %c2_i32 = arith.constant 2 : i32
    %27 = vector.broadcast %c2_i32 : i32 to vector<1x4x1xi32>
    %28 = arith.cmpi slt, %26, %27 : vector<1x4x1xi32>
    %29 = vector.shape_cast %28 : vector<1x4x1xi1> to vector<1x4x1xi1>
    %30 = vector.broadcast %29 : vector<1x4x1xi1> to vector<2x4x1xi1>
    %31 = vector.shape_cast %19 : vector<1x4x1xf32> to vector<1x4x1xf32>
    %32 = vector.broadcast %31 : vector<1x4x1xf32> to vector<2x4x1xf32>
    %33 = arith.select %30, %9, %32 : vector<2x4x1xi1>, vector<2x4x1xf32>
    %34 = vector.shape_cast %28 : vector<1x4x1xi1> to vector<1x4x1xi1>
    %35 = vector.broadcast %34 : vector<1x4x1xi1> to vector<2x4x1xi1>
    %36 = vector.shape_cast %23 : vector<1x4x1xf32> to vector<1x4x1xf32>
    %37 = vector.broadcast %36 : vector<1x4x1xf32> to vector<2x4x1xf32>
    %38 = arith.select %35, %13, %37 : vector<2x4x1xi1>, vector<2x4x1xf32>
    %cst_9 = arith.constant 0.000000e+00 : f32
    %39 = vector.broadcast %cst_9 : f32 to vector<2x4x1xf32>
    %40 = arith.maximumf %38, %39 : vector<2x4x1xf32>
    %c0_10 = arith.constant 0 : index
    %41 = arith.index_cast %1 : i32 to index
    %c0_11 = arith.constant 0 : index
    %42 = vector.load %arg2[%c0_10, %41, %c0_11] : memref<1x4x1xf32, #tpu.memory_space<vmem>>, vector<1x4x1xf32>
    %c0_12 = arith.constant 0 : index
    %43 = arith.index_cast %1 : i32 to index
    %c0_13 = arith.constant 0 : index
    %44 = vector.load %arg3[%c0_12, %43, %c0_13] : memref<1x4x1xf32, #tpu.memory_space<vmem>>, vector<1x4x1xf32>
    %cst_14 = arith.constant 9.99999974E-6 : f32
    %45 = vector.broadcast %cst_14 : f32 to vector<2x4x1xf32>
    %46 = arith.addf %40, %45 : vector<2x4x1xf32>
    %47 = math.rsqrt %46 : vector<2x4x1xf32>
    %48 = vector.broadcast %42 : vector<1x4x1xf32> to vector<2x4x1xf32>
    %49 = arith.mulf %48, %47 : vector<2x4x1xf32>
    %50 = arith.mulf %33, %49 : vector<2x4x1xf32>
    %51 = vector.broadcast %44 : vector<1x4x1xf32> to vector<2x4x1xf32>
    %52 = arith.subf %51, %50 : vector<2x4x1xf32>
    %53 = vector.broadcast %49 : vector<2x4x1xf32> to vector<2x4x256xf32>
    %54 = arith.mulf %2, %53 : vector<2x4x256xf32>
    %55 = vector.broadcast %52 : vector<2x4x1xf32> to vector<2x4x256xf32>
    %56 = arith.addf %54, %55 : vector<2x4x256xf32>
    %c0_15 = arith.constant 0 : index
    %c0_16 = arith.constant 0 : index
    %c0_17 = arith.constant 0 : index
    %57 = vector.load %arg4[%c0_15, %c0_16, %c0_17] : memref<2x4x256xf32, #tpu.memory_space<vmem>>, vector<2x4x256xf32>
    tpu.vector_store %arg4[%c0_15, %c0_16, %c0_17], %56 {strides = array<i32>} : memref<2x4x256xf32, #tpu.memory_space<vmem>>, vector<2x4x256xf32>,
    return
  }
  func.func @transform_0(%arg0: i32) -> (i32, i32, i32) {
    %c0_i32 = arith.constant 0 : i32
    %c0_i32_0 = arith.constant 0 : i32
    %c0_i32_1 = arith.constant 0 : i32
    return %c0_i32, %arg0, %c0_i32_0 : i32, i32, i32
  }
  func.func @transform_1(%arg0: i32) -> (i32, i32, i32) {
    %c0_i32 = arith.constant 0 : i32
    %c0_i32_0 = arith.constant 0 : i32
    %c0_i32_1 = arith.constant 0 : i32
    %c0_i32_2 = arith.constant 0 : i32
    return %c0_i32, %c0_i32_0, %c0_i32_1 : i32, i32, i32
  }
  func.func @transform_2(%arg0: i32) -> (i32, i32, i32) {
    %c0_i32 = arith.constant 0 : i32
    %c0_i32_0 = arith.constant 0 : i32
    %c0_i32_1 = arith.constant 0 : i32
    %c0_i32_2 = arith.constant 0 : i32
    return %c0_i32, %c0_i32_0, %c0_i32_1 : i32, i32, i32
  }
  func.func @transform_3(%arg0: i32) -> (i32, i32, i32) {
    %c0_i32 = arith.constant 0 : i32
    %c0_i32_0 = arith.constant 0 : i32
    %c0_i32_1 = arith.constant 0 : i32
    return %c0_i32, %arg0, %c0_i32_0 : i32, i32, i32
  }
}

</mosaic_0001>

<llo_original>
// kernel: tpu_custom_call.1
$region0: #{tpu_custom_call.1}
  #allocation0 [shape = 'u32[]', space=smem, size = 0x4, offset = 0x4, fixed_abs, tag = 'smem constant byte address 0x4 - core index']
  #allocation1 [shape = 'u32[144,128]{1,0:T(1,128)}', space=vmem, size = 0x12000, scoped, tag = 'internal scratch']
  %s0 = inlined_call_operand.hbm [shape: f32[2,4,256], index: 0, kind: input, shape index: {}]
  %s1 = inlined_call_operand.hbm [shape: f32[1,4,1], index: 1, kind: input, shape index: {}]
  %s2 = inlined_call_operand.hbm [shape: f32[1,4,1], index: 2, kind: input, shape index: {}]
  %s3 = inlined_call_operand.hbm [shape: f32[2,4,256], index: 3, kind: output, shape index: {}]
  %s4 = sld [smem:[#allocation0]]
  $region34: #{tpu_custom_call.1} parent=0
    _
  %s6 = ssub.s32 1, %s4
  %s7 = scalar_select 0, %s6, %s4
  $region1: #{tpu_custom_call.1} parent=0
    #allocation2 [shape = 'u8[8192]{0}', space=vmem, size = 0x2000, scoped, tag = 'input window, operand 0, single buffered']
    #allocation3 [shape = 's32[1]{0}', space=sflag, size = 0x4, scoped, tag = 'scoped memory for tpu_custom_call.1']
    #allocation4 [shape = 's32[1]{0}', space=sflag, size = 0x4, scoped, tag = 'scoped memory for tpu_custom_call.1']
    #allocation5 [shape = 'u8[2048]{0}', space=vmem, size = 0x800, scoped, tag = 'input window, operand 1, single buffered']
    #allocation6 [shape = 's32[1]{0}', space=sflag, size = 0x4, scoped, tag = 'scoped memory for tpu_custom_call.1']
    #allocation7 [shape = 'u8[2048]{0}', space=vmem, size = 0x800, scoped, tag = 'input window, operand 2, single buffered']
    #allocation8 [shape = 'u8[8192]{0}', space=vmem, size = 0x2000, scoped, tag = 'output window, operand 0, single buffered']
    %8 = vsyncpa [#allocation3], 0
    %9 = vsyncpa [#allocation6], 0
    %10 = vsyncpa [#allocation4], 0
    // Predicated region
    $region2: #{tpu_custom_call.1} parent=1 // pred_check
      _
    $region3: #{tpu_custom_call.1} parent=1 // pred_check_branch
      %12 = sbr.rel (0) target = $region5
    $region4: #{tpu_custom_call.1} parent=1 // pred_region
      %s14 = ssub.s32 256, 256
      %15 = vsyncadd [#allocation3], %s14
      %s16 = sshll.u32 [#allocation2], 4
      %s17 = int_to_ptr.vmem [resolvable:$true] %s16
      %22 = dma.hbm_to_vmem [thread:$0]  %s0, 256, %s17, [#allocation3], 128, 128, 8
    $region5: #{tpu_custom_call.1} parent=1 // pred_fallthru
      _
    // Predicated region
    $region6: #{tpu_custom_call.1} parent=1 // pred_check
      _
    $region7: #{tpu_custom_call.1} parent=1 // pred_check_branch
      %24 = sbr.rel (0) target = $region9
    $region8: #{tpu_custom_call.1} parent=1 // pred_region
      %s26 = ssub.s32 64, 64
      %27 = vsyncadd [#allocation6], %s26
      %s29 = sshll.u32 [#allocation5], 4
      %s30 = int_to_ptr.vmem [resolvable:$true] %s29
      %32 = dma.hbm_to_vmem [thread:$0]  %s1, 64, %s30, [#allocation6]
    $region9: #{tpu_custom_call.1} parent=1 // pred_fallthru
      _
    // Predicated region
    $region10: #{tpu_custom_call.1} parent=1 // pred_check
      _
    $region11: #{tpu_custom_call.1} parent=1 // pred_check_branch
      %34 = sbr.rel (0) target = $region13
    $region12: #{tpu_custom_call.1} parent=1 // pred_region
      %s36 = ssub.s32 64, 64
      %37 = vsyncadd [#allocation6], %s36
      %s39 = sshll.u32 [#allocation7], 4
      %s40 = int_to_ptr.vmem [resolvable:$true] %s39
      %42 = dma.hbm_to_vmem [thread:$0]  %s2, 64, %s40, [#allocation6]
    $region13: #{tpu_custom_call.1} parent=1 // pred_fallthru
      _
    // Predicated region
    $region14: #{tpu_custom_call.1} parent=1 // pred_check
      _
    $region15: #{tpu_custom_call.1} parent=1 // pred_check_branch
      %44 = sbr.rel (0) target = $region17
    $region16: #{tpu_custom_call.1} parent=1 // pred_region
      %45 = dma.done [#allocation3], 256
    $region17: #{tpu_custom_call.1} parent=1 // pred_fallthru
      _
    // Predicated region
    $region18: #{tpu_custom_call.1} parent=1 // pred_check
      _
    $region19: #{tpu_custom_call.1} parent=1 // pred_check_branch
      %47 = sbr.rel (0) target = $region21
    $region20: #{tpu_custom_call.1} parent=1 // pred_region
      %48 = dma.done [#allocation6], 64
    $region21: #{tpu_custom_call.1} parent=1 // pred_fallthru
      _
    // Predicated region
    $region22: #{tpu_custom_call.1} parent=1 // pred_check
      _
    $region23: #{tpu_custom_call.1} parent=1 // pred_check_branch
      %50 = sbr.rel (0) target = $region25
    $region24: #{tpu_custom_call.1} parent=1 // pred_region
      %51 = dma.done [#allocation6], 64
    $region25: #{tpu_custom_call.1} parent=1 // pred_fallthru
      _
    %s52 = smul.u32 0, 4
    %v53 = vld [vmem:[#allocation2] sm:$0xff]
    %v54 = vld [vmem:[#allocation2 + $0x8] sm:$0xff]
    %v57 = vcombine.high %v53, %v53
    %v58 = vcombine.high %v54, %v54
    %vm61 = vcmask 1043456
    %v62 = vsel %vm61, %v53, 0.0
    %v63 = vsel %vm61, %v57, 0.0
    %v64 = vadd.f32 %v62, %v63
    %65 = vadd.xlane.f32.xlu0 %v64
    %v66 = vpop.xlane.xlu0 %65
    %v67 = vsel %vm61, %v54, 0.0
    %v68 = vsel %vm61, %v58, 0.0
    %v69 = vadd.f32 %v67, %v68
    %70 = vadd.xlane.f32.xlu0 %v69
    %v71 = vpop.xlane.xlu0 %70
    %v72 = vmul.f32 %v53, %v53
    %v73 = vmul.f32 %v54, %v54
    %v76 = vcombine.high %v72, %v72
    %v77 = vcombine.high %v73, %v73
    %v80 = vsel %vm61, %v72, 0.0
    %v81 = vsel %vm61, %v76, 0.0
    %v82 = vadd.f32 %v80, %v81
    %83 = vadd.xlane.f32.xlu0 %v82
    %v84 = vpop.xlane.xlu0 %83
    %v85 = vsel %vm61, %v73, 0.0
    %v86 = vsel %vm61, %v77, 0.0
    %v87 = vadd.f32 %v85, %v86
    %88 = vadd.xlane.f32.xlu0 %v87
    %v89 = vpop.xlane.xlu0 %88
    %v90 = vmul.f32 %v66, 0.00390625
    %v91 = vmul.f32 %v71, 0.00390625
    %v92 = vmul.f32 %v84, 0.00390625
    %v93 = vmul.f32 %v89, 0.00390625
    %v94 = vmul.f32 %v90, %v90
    %v95 = vmul.f32 %v91, %v91
    %v96 = vsub.f32 %v92, %v94
    %v97 = vsub.f32 %v93, %v95
    %v98 = vsel %vm61, %v66, 0.0
    %v99 = vsel %vm61, %v71, 0.0
    %v100 = vadd.f32 %v98, %v99
    %v101 = vsel %vm61, %v84, 0.0
    %v102 = vsel %vm61, %v89, 0.0
    %v103 = vadd.f32 %v101, %v102
    %v104 = vmul.f32 %v100, 0.001953125
    %v105 = vmul.f32 %v103, 0.001953125
    %v106 = vmul.f32 %v104, %v104
    %v107 = vsub.f32 %v105, %v106
    %v108 = vlaneseq
    %v109 = vshrl.u32 %v108, 7
    %v110 = vstv %s52
    %v111 = vadd.s32 %v110, %v109
    %vm112 = vcmp.lt.s32.totalorder %v111, 2
    %v113 = vsel %vm112, 1, 0
    %vm114 = vcmp.eq.s32.totalorder %v113, 1
    %v115 = vsel %vm114, %v90, %v104
    %v116 = vsel %vm114, %v91, %v104
    %v117 = vsel %vm114, %v96, %v107
    %v118 = vsel %vm114, %v97, %v107
    %v119 = vmax.f32 %v117, 0.0
    %v120 = vmax.f32 %v118, 0.0
    %s121 = scalar_lea.vmem [#allocation5], %s52
    %v122 = vld [vmem:[%s121] sm:$0xf]
    %s123 = scalar_lea.vmem [#allocation7], %s52
    %v124 = vld [vmem:[%s123] sm:$0xf]
    %v125 = vadd.f32 %v119, 1e-05
    %v126 = vadd.f32 %v120, 1e-05
    %v127 = vrsqrt.pop %v125
    %v128 = vrsqrt.pop %v126
    %v129 = vmul.f32 %v122, %v127
    %v130 = vmul.f32 %v122, %v128
    %v131 = vmul.f32 %v115, %v129
    %v132 = vmul.f32 %v116, %v130
    %v133 = vsub.f32 %v124, %v131
    %v134 = vsub.f32 %v124, %v132
    %136 = vset.pattern.permute.xlu0 0
    %137 = vperm.xlu0 %136, %v129
    %v138 = vpop.permute.xlu0 %137
    %140 = vset.pattern.permute.xlu0 0
    %141 = vperm.xlu0 %140, %v130
    %v142 = vpop.permute.xlu0 %141
    %v144 = vunpack.c.l.s4 839922192
    %v145 = vunpack.c.0.s8 %v144
    %v146 = vlaneseq
    %v147 = vshrl.u32 %v146, 7
    %v148 = vsub.s32 %v145, %v147
    %v149 = vrot.slane %v138, %v148
    %v151 = vunpack.c.l.s4 839922192
    %v152 = vunpack.c.0.s8 %v151
    %v153 = vlaneseq
    %v154 = vshrl.u32 %v153, 7
    %v155 = vsub.s32 %v152, %v154
    %v156 = vrot.slane %v142, %v155
    %v159 = vmul.f32 %v53, %v149
    %v160 = vmul.f32 %v54, %v156
    %162 = vset.pattern.permute.xlu0 0
    %163 = vperm.xlu0 %162, %v133
    %v164 = vpop.permute.xlu0 %163
    %166 = vset.pattern.permute.xlu0 0
    %167 = vperm.xlu0 %166, %v134
    %v168 = vpop.permute.xlu0 %167
    %v170 = vunpack.c.l.s4 839922192
    %v171 = vunpack.c.0.s8 %v170
    %v172 = vlaneseq
    %v173 = vshrl.u32 %v172, 7
    %v174 = vsub.s32 %v171, %v173
    %v175 = vrot.slane %v164, %v174
    %v177 = vunpack.c.l.s4 839922192
    %v178 = vunpack.c.0.s8 %v177
    %v179 = vlaneseq
    %v180 = vshrl.u32 %v179, 7
    %v181 = vsub.s32 %v178, %v180
    %v182 = vrot.slane %v168, %v181
    %v185 = vadd.f32 %v159, %v175
    %v186 = vadd.f32 %v160, %v182
    %187 = vst [vmem:[#allocation8] sm:$0xff] %v185
    %188 = vst [vmem:[#allocation8 + $0x8] sm:$0xff] %v186
    // Predicated region
    $region26: #{tpu_custom_call.1} parent=1 // pred_check
      _
    $region27: #{tpu_custom_call.1} parent=1 // pred_check_branch
      %190 = sbr.rel (0) target = $region29
    $region28: #{tpu_custom_call.1} parent=1 // pred_region
      %s192 = ssub.s32 256, 256
      %193 = vsyncadd [#allocation4], %s192
      %s194 = sshll.u32 [#allocation8], 4
      %s195 = int_to_ptr.vmem [resolvable:$true] %s194
      %200 = dma.vmem_to_hbm [thread:$0]  %s195, 256, %s3, [#allocation4], 128, 128, 8
    $region29: #{tpu_custom_call.1} parent=1 // pred_fallthru
      _
    // Predicated region
    $region30: #{tpu_custom_call.1} parent=1 // pred_check
      _
    $region31: #{tpu_custom_call.1} parent=1 // pred_check_branch
      %202 = sbr.rel (0) target = $region33
    $region32: #{tpu_custom_call.1} parent=1 // pred_region
      %203 = dma.done [#allocation4], 256
    $region33: #{tpu_custom_call.1} parent=1 // pred_fallthru
      _
    %204 = vsyncpa [#allocation3], 1
    %205 = vsyncpa [#allocation6], 1
    %206 = vsyncpa [#allocation4], 1

</llo_original>
